<compile_context>
chip_gen: v5e
topology: v5e:2x2
jax: 0.10.0
libtpu: 0.0.40
codegen_flags: <defaults>
</compile_context>

<pallas_src>
import jax
import jax.numpy as jnp
from jax.experimental import pallas as pl
from jax.experimental.pallas import tpu as pltpu

_LANE = 128  # TPU lane width


def _mlp_kernel(x_ref, w1_ref, b1_ref, w2_ref, b2_ref, w3_ref, b3_ref, o_ref):
    # x_ref: (state_dim, bt)   w1: (128, state_dim)  b1: (128, 1)
    # w2: (64, 128)  b2: (64, 1)  w3: (64, 1)  b3: (1, 1)   o_ref: (1, bt)
    xt = x_ref[...]

    # Layer 1: (128, state_dim) @ (state_dim, bt) -> (128, bt), f32 accumulate.
    h1 = jnp.dot(w1_ref[...], xt, preferred_element_type=jnp.float32)
    h1 = jnp.maximum(h1 + b1_ref[...], 0.0)

    # Layer 2: (64, 128) @ (128, bt) -> (64, bt).
    h2 = jnp.dot(w2_ref[...], h1.astype(w2_ref.dtype),
                 preferred_element_type=jnp.float32)
    h2 = jnp.maximum(h2 + b2_ref[...], 0.0)

    # Layer 3 (out_features == 1): VPU multiply + sublane (XLU) reduce instead
    # of a 1-column MXU matmul.  Result is (1, bt) -> lane-dense store.
    out = jnp.sum(h2 * w3_ref[...], axis=0, keepdims=True) + b3_ref[...]
    o_ref[...] = out.astype(o_ref.dtype)


def preference_model_forward(x, params, *, batch_tile=512,
                             compute_dtype=jnp.float32):
    """x: (B, state_dim) float32.  params: PyTorch-layout weights/biases.

    batch_tile: lane-aligned rows per grid step (sweep 512-2048; keep the grid
    length >= 8 on v7x so both TensorCores stay busy for large B).
    compute_dtype: jnp.float32 or jnp.bfloat16 for the matmul operands
    (accumulation is always f32).
    """
    B, state_dim = x.shape
    w1, b1 = params["w1"], params["b1"]   # (128, state_dim), (128, 1)
    w2, b2 = params["w2"], params["b2"]   # (64, 128),        (64, 1)
    w3, b3 = params["w3"], params["b3"]   # (64, 1),          (1, 1)

    # Lane-aligned tile, clamped to the (padded) batch.
    bt = max(_LANE, min(int(batch_tile), pl.cdiv(B, _LANE) * _LANE))
    bt = (bt // _LANE) * _LANE
    b_pad = pl.cdiv(B, bt) * bt
    num_tiles = b_pad // bt

    # Wrapper-side layout plumbing (cheap XLA ops): pad the ragged batch, put
    # the batch on the lane axis, optionally down-cast the matmul operands.
    xt = jnp.pad(x, ((0, b_pad - B), (0, 0))).T.astype(compute_dtype)
    w1c = w1.astype(compute_dtype)
    w2c = w2.astype(compute_dtype)

    def full(a):  # whole (small) array resident every grid step
        return pl.BlockSpec(a.shape, lambda i: (0, 0))

    itemsize = jnp.dtype(compute_dtype).itemsize
    cost = pl.CostEstimate(
        flops=2 * b_pad * (state_dim * 128 + 128 * 64 + 64),
        transcendentals=0,
        bytes_accessed=(b_pad * state_dim * itemsize            # x
                        + (w1c.size + w2c.size) * itemsize      # matmul weights
                        + (b1.size + b2.size + w3.size + b3.size) * 4
                        + b_pad * 4))                           # output

    out = pl.pallas_call(
        _mlp_kernel,
        out_shape=jax.ShapeDtypeStruct((1, b_pad), jnp.float32),
        grid_spec=pltpu.PrefetchScalarGridSpec(
            num_scalar_prefetch=0,
            grid=(num_tiles,),
            in_specs=[
                pl.BlockSpec((state_dim, bt), lambda i: (0, i)),  # x tile
                full(w1c), full(b1),
                full(w2c), full(b2),
                full(w3), full(b3),
            ],
            out_specs=pl.BlockSpec((1, bt), lambda i: (0, i)),    # lane-dense
        ),
        compiler_params=pltpu.CompilerParams(
            dimension_semantics=("parallel",)),
        cost_estimate=cost,
    )(xt, w1c, b1, w2c, b2, w3, b3)

    return out[0, :B].reshape(B, 1)


def init_params(state_dim, key):
    """nn.Linear-equivalent init: W (out,in), b (out,1), U(-1/sqrt(in), 1/sqrt(in))."""
    ks = jax.random.split(key, 6)

    def linear(kw, kb, fan_in, fan_out):
        bound = 1.0 / jnp.sqrt(jnp.float32(fan_in))
        w = jax.random.uniform(kw, (fan_out, fan_in), jnp.float32, -bound, bound)
        b = jax.random.uniform(kb, (fan_out, 1), jnp.float32, -bound, bound)
        return w, b

    w1, b1 = linear(ks[0], ks[1], state_dim, 128)
    w2, b2 = linear(ks[2], ks[3], 128, 64)
    w3, b3 = linear(ks[4], ks[5], 64, 1)
    return dict(w1=w1, b1=b1, w2=w2, b2=b2,
                w3=w3.reshape(64, 1),   # column form used by the VPU layer
                b3=b3)


def reference_forward(x, p):
    h1 = jnp.maximum(x @ p["w1"].T + p["b1"].T, 0.0)
    h2 = jnp.maximum(h1 @ p["w2"].T + p["b2"].T, 0.0)
    return h2 @ p["w3"] + p["b3"]


if __name__ == "__main__":
    key = jax.random.PRNGKey(0)
    k_x, k_p = jax.random.split(key)

    batch, state_dim = 200, 32          # ragged batch exercises padding path
    x = jax.random.normal(k_x, (batch, state_dim), jnp.float32)
    params = init_params(state_dim, k_p)
    ref = reference_forward(x, params)

    # f32 operands, 2 grid steps (128-row tiles): tight check vs reference.
    out_f32 = jax.block_until_ready(
        preference_model_forward(x, params, batch_tile=128))
    assert out_f32.shape == (batch, 1)
    assert jnp.allclose(out_f32, ref, atol=1e-4, rtol=1e-4), "f32 mismatch"

    # bf16 matmul operands (MXU-native on v5e/v6e/v7x), f32 accumulation.
    out_bf16 = jax.block_until_ready(
        preference_model_forward(x, params, batch_tile=512,
                                 compute_dtype=jnp.bfloat16))
    assert out_bf16.shape == (batch, 1)
    assert jnp.allclose(out_bf16, ref, atol=5e-2, rtol=5e-2), "bf16 mismatch"

    print("KERNEL_OK")
</pallas_src>

<mosaic_0001>
module attributes {stable_mosaic.version = 11 : i64} {
  func.func @_mlp_kernel(%arg0: i32, %arg1: memref<32x128xf32, #tpu.memory_space<vmem>>, %arg2: memref<128x32xf32, #tpu.memory_space<vmem>>, %arg3: memref<128x1xf32, #tpu.memory_space<vmem>>, %arg4: memref<64x128xf32, #tpu.memory_space<vmem>>, %arg5: memref<64x1xf32, #tpu.memory_space<vmem>>, %arg6: memref<64x1xf32, #tpu.memory_space<vmem>>, %arg7: memref<1x1xf32, #tpu.memory_space<vmem>>, %arg8: memref<1x128xf32, #tpu.memory_space<vmem>>) attributes {dimension_semantics = [#tpu.dimension_semantics<parallel>], iteration_bounds = array<i64: 2>, scalar_prefetch = 0 : i64, scratch_operands = 0 : i64, tpu.core_type = #tpu.core_type<tc>, window_params = [{transform_indices = @transform_0, window_bounds = array<i64: 32, 128>}, {pipeline_mode = #tpu.pipeline_mode<synchronous>, transform_indices = @transform_1, window_bounds = array<i64: 128, 32>}, {pipeline_mode = #tpu.pipeline_mode<synchronous>, transform_indices = @transform_2, window_bounds = array<i64: 128, 1>}, {pipeline_mode = #tpu.pipeline_mode<synchronous>, transform_indices = @transform_3, window_bounds = array<i64: 64, 128>}, {pipeline_mode = #tpu.pipeline_mode<synchronous>, transform_indices = @transform_4, window_bounds = array<i64: 64, 1>}, {pipeline_mode = #tpu.pipeline_mode<synchronous>, transform_indices = @transform_5, window_bounds = array<i64: 64, 1>}, {pipeline_mode = #tpu.pipeline_mode<synchronous>, transform_indices = @transform_6, window_bounds = array<i64: 1, 1>}, {transform_indices = @transform_7, window_bounds = array<i64: 1, 128>}]} {
    %c0 = arith.constant 0 : index
    %c0_0 = arith.constant 0 : index
    %0 = vector.load %arg1[%c0, %c0_0] : memref<32x128xf32, #tpu.memory_space<vmem>>, vector<32x128xf32>
    %c0_1 = arith.constant 0 : index
    %c0_2 = arith.constant 0 : index
    %1 = vector.load %arg2[%c0_1, %c0_2] : memref<128x32xf32, #tpu.memory_space<vmem>>, vector<128x32xf32>
    %cst = arith.constant dense<0.000000e+00> : vector<128x128xf32>
    %2 = tpu.matmul %1, %0, %cst {dimension_numbers = #tpu.dot_dimension_numbers<[1], [0], [0], [1], [0, 0, 1, 1], [], []>} : vector<128x32xf32>, vector<32x128xf32>, vector<128x128xf32> -> vector<128x128xf32>
    %c0_3 = arith.constant 0 : index
    %c0_4 = arith.constant 0 : index
    %3 = vector.load %arg3[%c0_3, %c0_4] : memref<128x1xf32, #tpu.memory_space<vmem>>, vector<128x1xf32>
    %4 = vector.broadcast %3 : vector<128x1xf32> to vector<128x128xf32>
    %5 = arith.addf %2, %4 : vector<128x128xf32>
    %cst_5 = arith.constant 0.000000e+00 : f32
    %6 = vector.broadcast %cst_5 : f32 to vector<128x128xf32>
    %7 = arith.maximumf %5, %6 : vector<128x128xf32>
    %c0_6 = arith.constant 0 : index
    %c0_7 = arith.constant 0 : index
    %8 = vector.load %arg4[%c0_6, %c0_7] : memref<64x128xf32, #tpu.memory_space<vmem>>, vector<64x128xf32>
    %cst_8 = arith.constant dense<0.000000e+00> : vector<64x128xf32>
    %9 = tpu.matmul %8, %7, %cst_8 {dimension_numbers = #tpu.dot_dimension_numbers<[1], [0], [0], [1], [0, 0, 1, 1], [], []>} : vector<64x128xf32>, vector<128x128xf32>, vector<64x128xf32> -> vector<64x128xf32>
    %c0_9 = arith.constant 0 : index
    %c0_10 = arith.constant 0 : index
    %10 = vector.load %arg5[%c0_9, %c0_10] : memref<64x1xf32, #tpu.memory_space<vmem>>, vector<64x1xf32>
    %11 = vector.broadcast %10 : vector<64x1xf32> to vector<64x128xf32>
    %12 = arith.addf %9, %11 : vector<64x128xf32>
    %cst_11 = arith.constant 0.000000e+00 : f32
    %13 = vector.broadcast %cst_11 : f32 to vector<64x128xf32>
    %14 = arith.maximumf %12, %13 : vector<64x128xf32>
    %c0_12 = arith.constant 0 : index
    %c0_13 = arith.constant 0 : index
    %15 = vector.load %arg6[%c0_12, %c0_13] : memref<64x1xf32, #tpu.memory_space<vmem>>, vector<64x1xf32>
    %16 = vector.broadcast %15 : vector<64x1xf32> to vector<64x128xf32>
    %17 = arith.mulf %14, %16 : vector<64x128xf32>
    %cst_14 = arith.constant dense<0.000000e+00> : vector<128xf32>
    %18 = vector.multi_reduction <add>, %17, %cst_14 [0] : vector<64x128xf32> to vector<128xf32>
    %19 = vector.shape_cast %18 : vector<128xf32> to vector<1x128xf32>
    %c0_15 = arith.constant 0 : index
    %c0_16 = arith.constant 0 : index
    %20 = vector.load %arg7[%c0_15, %c0_16] : memref<1x1xf32, #tpu.memory_space<vmem>>, vector<1x1xf32>
    %21 = vector.broadcast %20 : vector<1x1xf32> to vector<1x128xf32>
    %22 = arith.addf %19, %21 : vector<1x128xf32>
    %c0_17 = arith.constant 0 : index
    %c0_18 = arith.constant 0 : index
    %23 = vector.load %arg8[%c0_17, %c0_18] : memref<1x128xf32, #tpu.memory_space<vmem>>, vector<1x128xf32>
    tpu.vector_store %arg8[%c0_17, %c0_18], %22 {strides = array<i32>} : memref<1x128xf32, #tpu.memory_space<vmem>>, vector<1x128xf32>,
    return
  }
  func.func @transform_0(%arg0: i32) -> (i32, i32) {
    %c0_i32 = arith.constant 0 : i32
    %c0_i32_0 = arith.constant 0 : i32
    return %c0_i32, %arg0 : i32, i32
  }
  func.func @transform_1(%arg0: i32) -> (i32, i32) {
    %c0_i32 = arith.constant 0 : i32
    %c0_i32_0 = arith.constant 0 : i32
    %c0_i32_1 = arith.constant 0 : i32
    return %c0_i32, %c0_i32_0 : i32, i32
  }
  func.func @transform_2(%arg0: i32) -> (i32, i32) {
    %c0_i32 = arith.constant 0 : i32
    %c0_i32_0 = arith.constant 0 : i32
    %c0_i32_1 = arith.constant 0 : i32
    return %c0_i32, %c0_i32_0 : i32, i32
  }
  func.func @transform_3(%arg0: i32) -> (i32, i32) {
    %c0_i32 = arith.constant 0 : i32
    %c0_i32_0 = arith.constant 0 : i32
    %c0_i32_1 = arith.constant 0 : i32
    return %c0_i32, %c0_i32_0 : i32, i32
  }
  func.func @transform_4(%arg0: i32) -> (i32, i32) {
    %c0_i32 = arith.constant 0 : i32
    %c0_i32_0 = arith.constant 0 : i32
    %c0_i32_1 = arith.constant 0 : i32
    return %c0_i32, %c0_i32_0 : i32, i32
  }
  func.func @transform_5(%arg0: i32) -> (i32, i32) {
    %c0_i32 = arith.constant 0 : i32
    %c0_i32_0 = arith.constant 0 : i32
    %c0_i32_1 = arith.constant 0 : i32
    return %c0_i32, %c0_i32_0 : i32, i32
  }
  func.func @transform_6(%arg0: i32) -> (i32, i32) {
    %c0_i32 = arith.constant 0 : i32
    %c0_i32_0 = arith.constant 0 : i32
    %c0_i32_1 = arith.constant 0 : i32
    return %c0_i32, %c0_i32_0 : i32, i32
  }
  func.func @transform_7(%arg0: i32) -> (i32, i32) {
    %c0_i32 = arith.constant 0 : i32
    %c0_i32_0 = arith.constant 0 : i32
    return %c0_i32, %arg0 : i32, i32
  }
}

</mosaic_0001>

<llo_original>
// kernel: tpu_custom_call.1
$region0: #{tpu_custom_call.1}
  #allocation0 [shape = 'u32[]', space=smem, size = 0x4, offset = 0x4, fixed_abs, tag = 'smem constant byte address 0x4 - core index']
  #allocation1 [shape = 'u32[72,128]{1,0:T(1,128)}', space=vmem, size = 0x9000, scoped, tag = 'internal scratch']
  #allocation2 [shape = 'f32[1,1]{1,0:T(1,128)S(1)}', space=vmem, size = 0x200, scoped, tag = 'scoped memory for tpu_custom_call.1']
  %s0 = inlined_call_operand.vmem [shape: f32[32,256], index: 0, kind: input, shape index: {}]
  %s1 = inlined_call_operand.vmem [shape: f32[128,32], index: 1, kind: input, shape index: {}]
  %s2 = inlined_call_operand.vmem [shape: f32[128,1], index: 2, kind: input, shape index: {}]
  %s3 = inlined_call_operand.vmem [shape: f32[64,128], index: 3, kind: input, shape index: {}]
  %s4 = inlined_call_operand.vmem [shape: f32[64,1], index: 4, kind: input, shape index: {}]
  %s5 = inlined_call_operand.vmem [shape: f32[64,1], index: 5, kind: input, shape index: {}]
  %s6 = inlined_call_operand.<no memory space> [shape: f32[1,1], index: 6, kind: input, shape index: {}]
  %s7 = inlined_call_operand.hbm [shape: f32[1,256], index: 7, kind: output, shape index: {}]
  %s8 = sld [smem:[#allocation0]]
  $region99: #{tpu_custom_call.1} parent=0
    _
  %s10 = ssub.s32 1, %s8
  %s11 = scalar_select 0, %s10, %s8
  %v12 = vstv %s6
  %13 = vst [vmem:[#allocation2] sm:$0x1] %v12
  $region1: #{tpu_custom_call.1} parent=0
    #allocation3 [shape = 'u8[32768]{0}', space=vmem, size = 0x8000, scoped, tag = 'input window, operand 0']
    #allocation4 [shape = 'u8[1024]{0}', space=vmem, size = 0x400, scoped, tag = 'output window, operand 0']
    #allocation5 [shape = 's32[2]{0}', space=sflag, size = 0x8, scoped, tag = 'scoped memory for tpu_custom_call.1']
    %14 = vsyncpa [#allocation5], 0
    %s15 = scalar_lea.sflag [#allocation5], 1
    %16 = vsyncpa %s15, 0
    loop: start=0, step=1, limit=4
    $region2: #{tpu_custom_call.1} parent=1 // loop_pre_header
      _
    $region3: #{tpu_custom_call.1} parent=1 // loop_header
      %s18 = sphi 0, %s22
      %p19 = scmp.ge.s32.totalorder %s18, 4
      %s28 = sphi 0, %s30
      %s31 = sphi 0, %s28
      %s32 = sphi 0, %s31
      %s48 = sphi 0, %s32
      %s52 = sphi 0, %s52
      %s54 = sphi 0, %s52
      %s55 = sphi 0, %s54
      %s69 = sphi 0, %s55
      %s73 = sphi 0, %s73
      %s75 = sphi 0, %s73
      %s76 = sphi 0, %s75
      %s90 = sphi 0, %s76
      %s94 = sphi 0, %s94
      %s96 = sphi 0, %s94
      %s97 = sphi 0, %s96
      %s111 = sphi 0, %s97
      %s115 = sphi 0, %s115
      %s117 = sphi 0, %s115
      %s118 = sphi 0, %s117
      %s132 = sphi 0, %s118
      %s136 = sphi 0, %s136
      %s138 = sphi 0, %s136
      %s139 = sphi 0, %s138
      %s153 = sphi 0, %s139
      %s157 = sphi 0, %s157
      %s159 = sphi 0, %s157
      %s160 = sphi 0, %s159
      %s174 = sphi 0, %s160
      %s180 = sphi 0, %s182
      %s183 = sphi 0, %s180
      %s184 = sphi 0, %s183
      %s200 = sphi 0, %s184
    $region4: #{tpu_custom_call.1} parent=1 // loop_header_branch
      %21 = sbr.rel (%p19) target = $region8
    $region5: #{tpu_custom_call.1} parent=1 // loop_body
      %s23 = ssub.s32 %s18, 1
      %s24 = ssub.s32 %s18, 2
      %s25 = sadd.s32 %s18, 1
      %s26 = ssub.s32 %s18, %s25
      %p27 = scmp.eq.s32.totalorder %s26, 0
      %s29 = sadd.s32 %s28, 1
      %s30 = scalar_select %p27, %s28, %s29
      %p33 = pneg %p27
      %p34 = scmp.eq.s32.totalorder %s18, 1
      %p35 = por %p33, %p34
      %p36 = scmp.ne.s32.totalorder %s28, %s31
      %p37 = scmp.eq.s32.totalorder %s18, 0
      %p38 = por %p36, %p37
      %p39 = scmp.ne.s32.totalorder %s28, %s31
      %p40 = scmp.eq.s32.totalorder %s23, 1
      %p41 = por %p39, %p40
      %p42 = scmp.ne.s32.totalorder %s31, %s32
      %p43 = scmp.eq.s32.totalorder %s23, 0
      %p44 = por %p42, %p43
      %p45 = scmp.ne.s32.totalorder %s31, %s32
      %p46 = scmp.eq.s32.totalorder %s24, 1
      %p47 = por %p45, %p46
      %p49 = scmp.ne.s32.totalorder %s32, %s48
      %p50 = scmp.eq.s32.totalorder %s24, 0
      %p51 = por %p49, %p50
      %s53 = sadd.s32 %s52, 1
      %p56 = scmp.eq.s32.totalorder %s18, 1
      %p57 = scmp.ne.s32.totalorder %s52, %s54
      %p58 = scmp.eq.s32.totalorder %s18, 0
      %p59 = por %p57, %p58
      %p60 = scmp.ne.s32.totalorder %s52, %s54
      %p61 = scmp.eq.s32.totalorder %s23, 1
      %p62 = por %p60, %p61
      %p63 = scmp.ne.s32.totalorder %s54, %s55
      %p64 = scmp.eq.s32.totalorder %s23, 0
      %p65 = por %p63, %p64
      %p66 = scmp.ne.s32.totalorder %s54, %s55
      %p67 = scmp.eq.s32.totalorder %s24, 1
      %p68 = por %p66, %p67
      %p70 = scmp.ne.s32.totalorder %s55, %s69
      %p71 = scmp.eq.s32.totalorder %s24, 0
      %p72 = por %p70, %p71
      %s74 = sadd.s32 %s73, 1
      %p77 = scmp.eq.s32.totalorder %s18, 1
      %p78 = scmp.ne.s32.totalorder %s73, %s75
      %p79 = scmp.eq.s32.totalorder %s18, 0
      %p80 = por %p78, %p79
      %p81 = scmp.ne.s32.totalorder %s73, %s75
      %p82 = scmp.eq.s32.totalorder %s23, 1
      %p83 = por %p81, %p82
      %p84 = scmp.ne.s32.totalorder %s75, %s76
      %p85 = scmp.eq.s32.totalorder %s23, 0
      %p86 = por %p84, %p85
      %p87 = scmp.ne.s32.totalorder %s75, %s76
      %p88 = scmp.eq.s32.totalorder %s24, 1
      %p89 = por %p87, %p88
      %p91 = scmp.ne.s32.totalorder %s76, %s90
      %p92 = scmp.eq.s32.totalorder %s24, 0
      %p93 = por %p91, %p92
      %s95 = sadd.s32 %s94, 1
      %p98 = scmp.eq.s32.totalorder %s18, 1
      %p99 = scmp.ne.s32.totalorder %s94, %s96
      %p100 = scmp.eq.s32.totalorder %s18, 0
      %p101 = por %p99, %p100
      %p102 = scmp.ne.s32.totalorder %s94, %s96
      %p103 = scmp.eq.s32.totalorder %s23, 1
      %p104 = por %p102, %p103
      %p105 = scmp.ne.s32.totalorder %s96, %s97
      %p106 = scmp.eq.s32.totalorder %s23, 0
      %p107 = por %p105, %p106
      %p108 = scmp.ne.s32.totalorder %s96, %s97
      %p109 = scmp.eq.s32.totalorder %s24, 1
      %p110 = por %p108, %p109
      %p112 = scmp.ne.s32.totalorder %s97, %s111
      %p113 = scmp.eq.s32.totalorder %s24, 0
      %p114 = por %p112, %p113
      %s116 = sadd.s32 %s115, 1
      %p119 = scmp.eq.s32.totalorder %s18, 1
      %p120 = scmp.ne.s32.totalorder %s115, %s117
      %p121 = scmp.eq.s32.totalorder %s18, 0
      %p122 = por %p120, %p121
      %p123 = scmp.ne.s32.totalorder %s115, %s117
      %p124 = scmp.eq.s32.totalorder %s23, 1
      %p125 = por %p123, %p124
      %p126 = scmp.ne.s32.totalorder %s117, %s118
      %p127 = scmp.eq.s32.totalorder %s23, 0
      %p128 = por %p126, %p127
      %p129 = scmp.ne.s32.totalorder %s117, %s118
      %p130 = scmp.eq.s32.totalorder %s24, 1
      %p131 = por %p129, %p130
      %p133 = scmp.ne.s32.totalorder %s118, %s132
      %p134 = scmp.eq.s32.totalorder %s24, 0
      %p135 = por %p133, %p134
      %s137 = sadd.s32 %s136, 1
      %p140 = scmp.eq.s32.totalorder %s18, 1
      %p141 = scmp.ne.s32.totalorder %s136, %s138
      %p142 = scmp.eq.s32.totalorder %s18, 0
      %p143 = por %p141, %p142
      %p144 = scmp.ne.s32.totalorder %s136, %s138
      %p145 = scmp.eq.s32.totalorder %s23, 1
      %p146 = por %p144, %p145
      %p147 = scmp.ne.s32.totalorder %s138, %s139
      %p148 = scmp.eq.s32.totalorder %s23, 0
      %p149 = por %p147, %p148
      %p150 = scmp.ne.s32.totalorder %s138, %s139
      %p151 = scmp.eq.s32.totalorder %s24, 1
      %p152 = por %p150, %p151
      %p154 = scmp.ne.s32.totalorder %s139, %s153
      %p155 = scmp.eq.s32.totalorder %s24, 0
      %p156 = por %p154, %p155
      %s158 = sadd.s32 %s157, 1
      %p161 = scmp.eq.s32.totalorder %s18, 1
      %p162 = scmp.ne.s32.totalorder %s157, %s159
      %p163 = scmp.eq.s32.totalorder %s18, 0
      %p164 = por %p162, %p163
      %p165 = scmp.ne.s32.totalorder %s157, %s159
      %p166 = scmp.eq.s32.totalorder %s23, 1
      %p167 = por %p165, %p166
      %p168 = scmp.ne.s32.totalorder %s159, %s160
      %p169 = scmp.eq.s32.totalorder %s23, 0
      %p170 = por %p168, %p169
      %p171 = scmp.ne.s32.totalorder %s159, %s160
      %p172 = scmp.eq.s32.totalorder %s24, 1
      %p173 = por %p171, %p172
      %p175 = scmp.ne.s32.totalorder %s160, %s174
      %p176 = scmp.eq.s32.totalorder %s24, 0
      %p177 = por %p175, %p176
      %s178 = ssub.s32 %s18, %s25
      %p179 = scmp.eq.s32.totalorder %s178, 0
      %s181 = sadd.s32 %s180, 1
      %s182 = scalar_select %p179, %s180, %s181
      %p185 = pneg %p179
      %p186 = scmp.eq.s32.totalorder %s18, 1
      %p187 = por %p185, %p186
      %p188 = scmp.ne.s32.totalorder %s180, %s183
      %p189 = scmp.eq.s32.totalorder %s18, 0
      %p190 = por %p188, %p189
      %p191 = scmp.ne.s32.totalorder %s180, %s183
      %p192 = scmp.eq.s32.totalorder %s23, 1
      %p193 = por %p191, %p192
      %p194 = scmp.ne.s32.totalorder %s183, %s184
      %p195 = scmp.eq.s32.totalorder %s23, 0
      %p196 = por %p194, %p195
      %p197 = scmp.ne.s32.totalorder %s183, %s184
      %p198 = scmp.eq.s32.totalorder %s24, 1
      %p199 = por %p197, %p198
      %p201 = scmp.ne.s32.totalorder %s184, %s200
      %p202 = scmp.eq.s32.totalorder %s24, 0
      %p203 = por %p201, %p202
      %p204 = scmp.le.s32.totalorder 1, %s18
      %p205 = scmp.lt.s32.totalorder %s18, 3
      %p206 = pnand %p204, %p205
      %p207 = pneg %p206
      // Predicated region
      $region9: #{tpu_custom_call.1} parent=5 // pred_check
        _
      $region10: #{tpu_custom_call.1} parent=5 // pred_check_branch
        %209 = sbr.rel (%p206) target = $region12
      $region11: #{tpu_custom_call.1} parent=5 // pred_region
        %s210 = ssub.s32 %s18, 1
        // Predicated region
        $region13: #{tpu_custom_call.1} parent=11 // pred_check
          %p211 = pneg %p65
        $region14: #{tpu_custom_call.1} parent=11 // pred_check_branch
          %213 = sbr.rel (%p211) target = $region16
        $region15: #{tpu_custom_call.1} parent=11 // pred_region
          _
        $region16: #{tpu_custom_call.1} parent=11 // pred_fallthru
          _
        // Predicated region
        $region17: #{tpu_custom_call.1} parent=11 // pred_check
          %p214 = pneg %p86
        $region18: #{tpu_custom_call.1} parent=11 // pred_check_branch
          %216 = sbr.rel (%p214) target = $region20
        $region19: #{tpu_custom_call.1} parent=11 // pred_region
          _
        $region20: #{tpu_custom_call.1} parent=11 // pred_fallthru
          _
        // Predicated region
        $region21: #{tpu_custom_call.1} parent=11 // pred_check
          %p217 = pneg %p107
        $region22: #{tpu_custom_call.1} parent=11 // pred_check_branch
          %219 = sbr.rel (%p217) target = $region24
        $region23: #{tpu_custom_call.1} parent=11 // pred_region
          _
        $region24: #{tpu_custom_call.1} parent=11 // pred_fallthru
          _
        // Predicated region
        $region25: #{tpu_custom_call.1} parent=11 // pred_check
          %p220 = pneg %p128
        $region26: #{tpu_custom_call.1} parent=11 // pred_check_branch
          %222 = sbr.rel (%p220) target = $region28
        $region27: #{tpu_custom_call.1} parent=11 // pred_region
          _
        $region28: #{tpu_custom_call.1} parent=11 // pred_fallthru
          _
        // Predicated region
        $region29: #{tpu_custom_call.1} parent=11 // pred_check
          %p223 = pneg %p149
        $region30: #{tpu_custom_call.1} parent=11 // pred_check_branch
          %225 = sbr.rel (%p223) target = $region32
        $region31: #{tpu_custom_call.1} parent=11 // pred_region
          _
        $region32: #{tpu_custom_call.1} parent=11 // pred_fallthru
          _
        // Predicated region
        $region33: #{tpu_custom_call.1} parent=11 // pred_check
          %p226 = pneg %p170
        $region34: #{tpu_custom_call.1} parent=11 // pred_check_branch
          %228 = sbr.rel (%p226) target = $region36
        $region35: #{tpu_custom_call.1} parent=11 // pred_region
          _
        $region36: #{tpu_custom_call.1} parent=11 // pred_fallthru
          _
      $region12: #{tpu_custom_call.1} parent=5 // pred_fallthru
        _
      %p229 = scmp.lt.s32.totalorder %s18, 2
      // Predicated region
      $region37: #{tpu_custom_call.1} parent=5 // pred_check
        %p230 = pneg %p229
      $region38: #{tpu_custom_call.1} parent=5 // pred_check_branch
        %232 = sbr.rel (%p230) target = $region40
      $region39: #{tpu_custom_call.1} parent=5 // pred_region
        // Predicated region
        $region41: #{tpu_custom_call.1} parent=39 // pred_check
          %p233 = pneg %p38
        $region42: #{tpu_custom_call.1} parent=39 // pred_check_branch
          %235 = sbr.rel (%p233) target = $region44
        $region43: #{tpu_custom_call.1} parent=39 // pred_region
          %s236 = sand.u32 %s28, 1
          %s237 = sand.u32 %s28, 1
          %s238 = smul.addr %s237, 32
          %s239 = scalar_lea.vmem [#allocation3], %s238
          %s240 = smul.addr %s18, 8
          %s241 = scalar_lea.vmem %s0, %s240
          // Predicated region
          $region45: #{tpu_custom_call.1} parent=43 // pred_check
            _
          $region46: #{tpu_custom_call.1} parent=43 // pred_check_branch
            %243 = sbr.rel (0) target = $region48
          $region47: #{tpu_custom_call.1} parent=43 // pred_region
            // Predicated region
            $region49: #{tpu_custom_call.1} parent=47 // pred_check
              _
            $region50: #{tpu_custom_call.1} parent=47 // pred_check_branch
              %245 = sbr.rel (0) target = $region52
            $region51: #{tpu_custom_call.1} parent=47 // pred_region
              // Predicated region
              $region64: #{tpu_custom_call.1} parent=51 // pred_check
                _
              $region65: #{tpu_custom_call.1} parent=51 // pred_check_branch
                %267 = sbr.rel (0) target = $region67
              $region66: #{tpu_custom_call.1} parent=51 // pred_region
                loop: start=0, step=1, limit=1
                $region68: #{tpu_custom_call.1} parent=66 // loop_pre_header
                  _
                $region69: #{tpu_custom_call.1} parent=66 // loop_header
                  %s269 = sphi 0, %s273
                  %p270 = scmp.ge.s32.totalorder %s269, 1
                  %s274 = sphi %s241, %s241
                  %s275 = sphi %s239, %s239
                $region70: #{tpu_custom_call.1} parent=66 // loop_header_branch
                  %272 = sbr.rel (%p270) target = $region74
                $region71: #{tpu_custom_call.1} parent=66 // loop_body
                  %v276 = vld [vmem:[%s274] sm:$0xff]
                  %277 = vst [vmem:[%s275] sm:$0xff] %v276
                  %v278 = vld [vmem:[%s274 + $0x10] sm:$0xff]
                  %279 = vst [vmem:[%s275 + $0x8] sm:$0xff] %v278
                  %v280 = vld [vmem:[%s274 + $0x20] sm:$0xff]
                  %281 = vst [vmem:[%s275 + $0x10] sm:$0xff] %v280
                  %v282 = vld [vmem:[%s274 + $0x30] sm:$0xff]
                  %283 = vst [vmem:[%s275 + $0x18] sm:$0xff] %v282
                $region72: #{tpu_custom_call.1} parent=66 // loop_footer
                  %s273 = sadd.s32 1, %s269
                $region73: #{tpu_custom_call.1} parent=66 // loop_footer_branch
                  %268 = sbr.rel target = $region69
                $region74: #{tpu_custom_call.1} parent=66 // loop_exit
                  _
              $region67: #{tpu_custom_call.1} parent=51 // pred_fallthru
                _
              // Predicated region
              $region75: #{tpu_custom_call.1} parent=51 // pred_check
                _
              $region76: #{tpu_custom_call.1} parent=51 // pred_check_branch
                %285 = sbr.rel target = $region78
              $region77: #{tpu_custom_call.1} parent=51 // pred_region
                _
              $region78: #{tpu_custom_call.1} parent=51 // pred_fallthru
                _
            $region52: #{tpu_custom_call.1} parent=47 // pred_fallthru
              _
            // Predicated region
            $region53: #{tpu_custom_call.1} parent=47 // pred_check
              _
            $region54: #{tpu_custom_call.1} parent=47 // pred_check_branch
              %247 = sbr.rel target = $region56
            $region55: #{tpu_custom_call.1} parent=47 // pred_region
              %s249 = ssub.s32 256, 1
              loop: start=0, step=1, limit=1
              $region57: #{tpu_custom_call.1} parent=55 // loop_pre_header
                _
              $region58: #{tpu_custom_call.1} parent=55 // loop_header
                %s251 = sphi 0, %s255
                %p252 = scmp.ge.s32.totalorder %s251, 1
                %s256 = sphi %s241, %s241
                %s257 = sphi %s239, %s239
              $region59: #{tpu_custom_call.1} parent=55 // loop_header_branch
                %254 = sbr.rel (%p252) target = $region63
              $region60: #{tpu_custom_call.1} parent=55 // loop_body
                %v258 = vld [vmem:[%s256] sm:%s249]
                %259 = vst [vmem:[%s257] sm:%s249] %v258
                %v260 = vld [vmem:[%s256 + $0x10] sm:%s249]
                %261 = vst [vmem:[%s257 + $0x8] sm:%s249] %v260
                %v262 = vld [vmem:[%s256 + $0x20] sm:%s249]
                %263 = vst [vmem:[%s257 + $0x10] sm:%s249] %v262
                %v264 = vld [vmem:[%s256 + $0x30] sm:%s249]
                %265 = vst [vmem:[%s257 + $0x18] sm:%s249] %v264
              $region61: #{tpu_custom_call.1} parent=55 // loop_footer
                %s255 = sadd.s32 1, %s251
              $region62: #{tpu_custom_call.1} parent=55 // loop_footer_branch
                %250 = sbr.rel target = $region58
              $region63: #{tpu_custom_call.1} parent=55 // loop_exit
                _
            $region56: #{tpu_custom_call.1} parent=47 // pred_fallthru
              _
          $region48: #{tpu_custom_call.1} parent=43 // pred_fallthru
            _
          %286 = vnop
        $region44: #{tpu_custom_call.1} parent=39 // pred_fallthru
          _
      $region40: #{tpu_custom_call.1} parent=5 // pred_fallthru
        _
      %p287 = scmp.le.s32.totalorder 1, %s18
      %p288 = scmp.lt.s32.totalorder %s18, 3
      %p289 = pnand %p287, %p288
      %p290 = pneg %p289
      // Predicated region
      $region79: #{tpu_custom_call.1} parent=5 // pred_check
        _
      $region80: #{tpu_custom_call.1} parent=5 // pred_check_branch
        %292 = sbr.rel (%p289) target = $region82
      $region81: #{tpu_custom_call.1} parent=5 // pred_region
        %s293 = ssub.s32 %s18, 1
        %s294 = sand.u32 %s31, 1
        %s295 = sand.u32 %s31, 1
        %s296 = smul.addr %s295, 32
        %s297 = scalar_lea.vmem [#allocation3], %s296
        // Predicated region
        $region83: #{tpu_custom_call.1} parent=81 // pred_check
          %p298 = pneg %p44
        $region84: #{tpu_custom_call.1} parent=81 // pred_check_branch
          %300 = sbr.rel (%p298) target = $region86
        $region85: #{tpu_custom_call.1} parent=81 // pred_region
          _
        $region86: #{tpu_custom_call.1} parent=81 // pred_fallthru
          _
        %s301 = sand.u32 %s31, 1
        %s302 = sand.u32 %s31, 1
        %s303 = smul.addr %s302, 32
        %s304 = scalar_lea.vmem [#allocation3], %s303
        %p305 = pneg %p44
        %p306 = pneg %p41
        %p307 = pneg %p65
        %p308 = pneg %p62
        %p309 = pneg %p86
        %p310 = pneg %p83
        %p311 = pneg %p107
        %p312 = pneg %p104
        %p313 = pneg %p128
        %p314 = pneg %p125
        %p315 = pneg %p149
        %p316 = pneg %p146
        %p317 = pneg %p170
        %p318 = pneg %p167
        %p319 = pneg %p196
        %p320 = pneg %p193
        %s321 = sand.u32 %s183, 1
        %s322 = scalar_lea.sflag [#allocation5], %s321
        %s323 = sand.u32 %s183, 1
        %s324 = scalar_lea.vmem [#allocation4], %s323
        %v325 = vld [vmem:[%s297] sm:$0xff]
        %v326 = vld [vmem:[%s297 + $0x8] sm:$0xff]
        %v327 = vld [vmem:[%s297 + $0x10] sm:$0xff]
        %v328 = vld [vmem:[%s297 + $0x18] sm:$0xff]
        %v329 = vld [vmem:[%s1] sm:$0xff]
        %v330 = vld [vmem:[%s1 + $0x8] sm:$0xff]
        %v331 = vld [vmem:[%s1 + $0x10] sm:$0xff]
        %v332 = vld [vmem:[%s1 + $0x18] sm:$0xff]
        %v333 = vld [vmem:[%s1 + $0x20] sm:$0xff]
        %v334 = vld [vmem:[%s1 + $0x28] sm:$0xff]
        %v335 = vld [vmem:[%s1 + $0x30] sm:$0xff]
        %v336 = vld [vmem:[%s1 + $0x38] sm:$0xff]
        %v337 = vld [vmem:[%s1 + $0x40] sm:$0xff]
        %v338 = vld [vmem:[%s1 + $0x48] sm:$0xff]
        %v339 = vld [vmem:[%s1 + $0x50] sm:$0xff]
        %v340 = vld [vmem:[%s1 + $0x58] sm:$0xff]
        %v341 = vld [vmem:[%s1 + $0x60] sm:$0xff]
        %v342 = vld [vmem:[%s1 + $0x68] sm:$0xff]
        %v343 = vld [vmem:[%s1 + $0x70] sm:$0xff]
        %v344 = vld [vmem:[%s1 + $0x78] sm:$0xff]
        %v345 = vld [vmem:[%s2] sm:$0xff]
        %v346 = vld [vmem:[%s2 + $0x8] sm:$0xff]
        %v347 = vld [vmem:[%s2 + $0x10] sm:$0xff]
        %v348 = vld [vmem:[%s2 + $0x18] sm:$0xff]
        %v349 = vld [vmem:[%s2 + $0x20] sm:$0xff]
        %v350 = vld [vmem:[%s2 + $0x28] sm:$0xff]
        %v351 = vld [vmem:[%s2 + $0x30] sm:$0xff]
        %v352 = vld [vmem:[%s2 + $0x38] sm:$0xff]
        %v353 = vld [vmem:[%s2 + $0x40] sm:$0xff]
        %v354 = vld [vmem:[%s2 + $0x48] sm:$0xff]
        %v355 = vld [vmem:[%s2 + $0x50] sm:$0xff]
        %v356 = vld [vmem:[%s2 + $0x58] sm:$0xff]
        %v357 = vld [vmem:[%s2 + $0x60] sm:$0xff]
        %v358 = vld [vmem:[%s2 + $0x68] sm:$0xff]
        %v359 = vld [vmem:[%s2 + $0x70] sm:$0xff]
        %v360 = vld [vmem:[%s2 + $0x78] sm:$0xff]
        %362 = vset.pattern.permute.xlu0 0
        %363 = vperm.xlu0 %362, %v345
        %v364 = vpop.permute.xlu0 %363
        %367 = vset.pattern.permute.xlu0 0
        %368 = vperm.xlu0 %367, %v346
        %v369 = vpop.permute.xlu0 %368
        %372 = vset.pattern.permute.xlu0 0
        %373 = vperm.xlu0 %372, %v347
        %v374 = vpop.permute.xlu0 %373
        %377 = vset.pattern.permute.xlu0 0
        %378 = vperm.xlu0 %377, %v348
        %v379 = vpop.permute.xlu0 %378
        %382 = vset.pattern.permute.xlu0 0
        %383 = vperm.xlu0 %382, %v349
        %v384 = vpop.permute.xlu0 %383
        %387 = vset.pattern.permute.xlu0 0
        %388 = vperm.xlu0 %387, %v350
        %v389 = vpop.permute.xlu0 %388
        %392 = vset.pattern.permute.xlu0 0
        %393 = vperm.xlu0 %392, %v351
        %v394 = vpop.permute.xlu0 %393
        %397 = vset.pattern.permute.xlu0 0
        %398 = vperm.xlu0 %397, %v352
        %v399 = vpop.permute.xlu0 %398
        %402 = vset.pattern.permute.xlu0 0
        %403 = vperm.xlu0 %402, %v353
        %v404 = vpop.permute.xlu0 %403
        %407 = vset.pattern.permute.xlu0 0
        %408 = vperm.xlu0 %407, %v354
        %v409 = vpop.permute.xlu0 %408
        %412 = vset.pattern.permute.xlu0 0
        %413 = vperm.xlu0 %412, %v355
        %v414 = vpop.permute.xlu0 %413
        %417 = vset.pattern.permute.xlu0 0
        %418 = vperm.xlu0 %417, %v356
        %v419 = vpop.permute.xlu0 %418
        %422 = vset.pattern.permute.xlu0 0
        %423 = vperm.xlu0 %422, %v357
        %v424 = vpop.permute.xlu0 %423
        %427 = vset.pattern.permute.xlu0 0
        %428 = vperm.xlu0 %427, %v358
        %v429 = vpop.permute.xlu0 %428
        %432 = vset.pattern.permute.xlu0 0
        %433 = vperm.xlu0 %432, %v359
        %v434 = vpop.permute.xlu0 %433
        %437 = vset.pattern.permute.xlu0 0
        %438 = vperm.xlu0 %437, %v360
        %v439 = vpop.permute.xlu0 %438
        %vm441 = vcmask 261120
        %v443 = vsel %vm441, %v329, 0
        %v446 = vsel %vm441, %v330, 0
        %v449 = vsel %vm441, %v331, 0
        %v452 = vsel %vm441, %v332, 0
        %v455 = vsel %vm441, %v333, 0
        %v458 = vsel %vm441, %v334, 0
        %v461 = vsel %vm441, %v335, 0
        %v464 = vsel %vm441, %v336, 0
        %v467 = vsel %vm441, %v337, 0
        %v470 = vsel %vm441, %v338, 0
        %v473 = vsel %vm441, %v339, 0
        %v476 = vsel %vm441, %v340, 0
        %v479 = vsel %vm441, %v341, 0
        %v482 = vsel %vm441, %v342, 0
        %v485 = vsel %vm441, %v343, 0
        %v488 = vsel %vm441, %v344, 0
        %490 = vmatpush.msra.mxu0 0.0
        %491 = vmatpush.msra.mxu0 0.0
        %492 = vmatpush.msra.mxu0 0.0
        %493 = vmatpush.msra.mxu0 0.0
        %494 = vmatpush.msra.mxu0 0.0
        %495 = vmatpush.msra.mxu0 0.0
        %496 = vmatpush.msra.mxu0 0.0
        %497 = vmatpush.msra.mxu0 0.0
        %498 = vmatpush.msra.mxu0 0.0
        %499 = vmatpush.msra.mxu0 0.0
        %500 = vmatpush.msra.mxu0 0.0
        %501 = vmatpush.msra.mxu0 0.0
        %502 = vmatpush.msra.mxu0 %v328
        %503 = vmatpush.msra.mxu0 %v327
        %504 = vmatpush.msra.mxu0 %v326
        %505 = vmatpush.msra.mxu0 %v325
        %506 = vmatmul.f32.gmra.mxu0 %v443
        %v507 = vpop.f32.mrf.mxu0
        %v508 = vadd.f32 %v364, %v507
        %509 = vmatmul.f32.gmra.mxu0 %v446
        %v510 = vpop.f32.mrf.mxu0
        %v511 = vadd.f32 %v369, %v510
        %512 = vmatmul.f32.gmra.mxu0 %v449
        %v513 = vpop.f32.mrf.mxu0
        %v514 = vadd.f32 %v374, %v513
        %515 = vmatmul.f32.gmra.mxu0 %v452
        %v516 = vpop.f32.mrf.mxu0
        %v517 = vadd.f32 %v379, %v516
        %518 = vmatmul.f32.gmra.mxu0 %v455
        %v519 = vpop.f32.mrf.mxu0
        %v520 = vadd.f32 %v384, %v519
        %521 = vmatmul.f32.gmra.mxu0 %v458
        %v522 = vpop.f32.mrf.mxu0
        %v523 = vadd.f32 %v389, %v522
        %524 = vmatmul.f32.gmra.mxu0 %v461
        %v525 = vpop.f32.mrf.mxu0
        %v526 = vadd.f32 %v394, %v525
        %527 = vmatmul.f32.gmra.mxu0 %v464
        %v528 = vpop.f32.mrf.mxu0
        %v529 = vadd.f32 %v399, %v528
        %530 = vmatmul.f32.gmra.mxu0 %v467
        %v531 = vpop.f32.mrf.mxu0
        %v532 = vadd.f32 %v404, %v531
        %533 = vmatmul.f32.gmra.mxu0 %v470
        %v534 = vpop.f32.mrf.mxu0
        %v535 = vadd.f32 %v409, %v534
        %536 = vmatmul.f32.gmra.mxu0 %v473
        %v537 = vpop.f32.mrf.mxu0
        %v538 = vadd.f32 %v414, %v537
        %539 = vmatmul.f32.gmra.mxu0 %v476
        %v540 = vpop.f32.mrf.mxu0
        %v541 = vadd.f32 %v419, %v540
        %542 = vmatmul.f32.gmra.mxu0 %v479
        %v543 = vpop.f32.mrf.mxu0
        %v544 = vadd.f32 %v424, %v543
        %545 = vmatmul.f32.gmra.mxu0 %v482
        %v546 = vpop.f32.mrf.mxu0
        %v547 = vadd.f32 %v429, %v546
        %548 = vmatmul.f32.gmra.mxu0 %v485
        %v549 = vpop.f32.mrf.mxu0
        %v550 = vadd.f32 %v434, %v549
        %551 = vmatmul.f32.gmra.mxu0 %v488
        %v552 = vpop.f32.mrf.mxu0
        %v553 = vadd.f32 %v439, %v552
        %554 = vdwg.mxu0
        %v555 = vmax.f32 %v508, 0.0
        %v556 = vmax.f32 %v511, 0.0
        %v557 = vmax.f32 %v514, 0.0
        %v558 = vmax.f32 %v517, 0.0
        %v559 = vmax.f32 %v520, 0.0
        %v560 = vmax.f32 %v523, 0.0
        %v561 = vmax.f32 %v526, 0.0
        %v562 = vmax.f32 %v529, 0.0
        %v563 = vmax.f32 %v532, 0.0
        %v564 = vmax.f32 %v535, 0.0
        %v565 = vmax.f32 %v538, 0.0
        %v566 = vmax.f32 %v541, 0.0
        %v567 = vmax.f32 %v544, 0.0
        %v568 = vmax.f32 %v547, 0.0
        %v569 = vmax.f32 %v550, 0.0
        %v570 = vmax.f32 %v553, 0.0
        %v571 = vld [vmem:[%s3] sm:$0xff]
        %v572 = vld [vmem:[%s3 + $0x8] sm:$0xff]
        %v573 = vld [vmem:[%s3 + $0x10] sm:$0xff]
        %v574 = vld [vmem:[%s3 + $0x18] sm:$0xff]
        %v575 = vld [vmem:[%s3 + $0x20] sm:$0xff]
        %v576 = vld [vmem:[%s3 + $0x28] sm:$0xff]
        %v577 = vld [vmem:[%s3 + $0x30] sm:$0xff]
        %v578 = vld [vmem:[%s3 + $0x38] sm:$0xff]
        %v579 = vld [vmem:[%s4] sm:$0xff]
        %v580 = vld [vmem:[%s4 + $0x8] sm:$0xff]
        %v581 = vld [vmem:[%s4 + $0x10] sm:$0xff]
        %v582 = vld [vmem:[%s4 + $0x18] sm:$0xff]
        %v583 = vld [vmem:[%s4 + $0x20] sm:$0xff]
        %v584 = vld [vmem:[%s4 + $0x28] sm:$0xff]
        %v585 = vld [vmem:[%s4 + $0x30] sm:$0xff]
        %v586 = vld [vmem:[%s4 + $0x38] sm:$0xff]
        %588 = vset.pattern.permute.xlu0 0
        %589 = vperm.xlu0 %588, %v579
        %v590 = vpop.permute.xlu0 %589
        %593 = vset.pattern.permute.xlu0 0
        %594 = vperm.xlu0 %593, %v580
        %v595 = vpop.permute.xlu0 %594
        %598 = vset.pattern.permute.xlu0 0
        %599 = vperm.xlu0 %598, %v581
        %v600 = vpop.permute.xlu0 %599
        %603 = vset.pattern.permute.xlu0 0
        %604 = vperm.xlu0 %603, %v582
        %v605 = vpop.permute.xlu0 %604
        %608 = vset.pattern.permute.xlu0 0
        %609 = vperm.xlu0 %608, %v583
        %v610 = vpop.permute.xlu0 %609
        %613 = vset.pattern.permute.xlu0 0
        %614 = vperm.xlu0 %613, %v584
        %v615 = vpop.permute.xlu0 %614
        %618 = vset.pattern.permute.xlu0 0
        %619 = vperm.xlu0 %618, %v585
        %v620 = vpop.permute.xlu0 %619
        %623 = vset.pattern.permute.xlu0 0
        %624 = vperm.xlu0 %623, %v586
        %v625 = vpop.permute.xlu0 %624
        %627 = vmatpush.msra.mxu0 %v570
        %628 = vmatpush.msra.mxu0 %v569
        %629 = vmatpush.msra.mxu0 %v568
        %630 = vmatpush.msra.mxu0 %v567
        %631 = vmatpush.msra.mxu0 %v566
        %632 = vmatpush.msra.mxu0 %v565
        %633 = vmatpush.msra.mxu0 %v564
        %634 = vmatpush.msra.mxu0 %v563
        %635 = vmatpush.msra.mxu0 %v562
        %636 = vmatpush.msra.mxu0 %v561
        %637 = vmatpush.msra.mxu0 %v560
        %638 = vmatpush.msra.mxu0 %v559
        %639 = vmatpush.msra.mxu0 %v558
        %640 = vmatpush.msra.mxu0 %v557
        %641 = vmatpush.msra.mxu0 %v556
        %642 = vmatpush.msra.mxu0 %v555
        %643 = vmatmul.f32.gmra.mxu0 %v571
        %v644 = vpop.f32.mrf.mxu0
        %v645 = vadd.f32 %v590, %v644
        %646 = vmatmul.f32.gmra.mxu0 %v572
        %v647 = vpop.f32.mrf.mxu0
        %v648 = vadd.f32 %v595, %v647
        %649 = vmatmul.f32.gmra.mxu0 %v573
        %v650 = vpop.f32.mrf.mxu0
        %v651 = vadd.f32 %v600, %v650
        %652 = vmatmul.f32.gmra.mxu0 %v574
        %v653 = vpop.f32.mrf.mxu0
        %v654 = vadd.f32 %v605, %v653
        %655 = vmatmul.f32.gmra.mxu0 %v575
        %v656 = vpop.f32.mrf.mxu0
        %v657 = vadd.f32 %v610, %v656
        %658 = vmatmul.f32.gmra.mxu0 %v576
        %v659 = vpop.f32.mrf.mxu0
        %v660 = vadd.f32 %v615, %v659
        %661 = vmatmul.f32.gmra.mxu0 %v577
        %v662 = vpop.f32.mrf.mxu0
        %v663 = vadd.f32 %v620, %v662
        %664 = vmatmul.f32.gmra.mxu0 %v578
        %v665 = vpop.f32.mrf.mxu0
        %v666 = vadd.f32 %v625, %v665
        %667 = vdwg.mxu0
        %v668 = vmax.f32 %v645, 0.0
        %v669 = vmax.f32 %v648, 0.0
        %v670 = vmax.f32 %v651, 0.0
        %v671 = vmax.f32 %v654, 0.0
        %v672 = vmax.f32 %v657, 0.0
        %v673 = vmax.f32 %v660, 0.0
        %v674 = vmax.f32 %v663, 0.0
        %v675 = vmax.f32 %v666, 0.0
        %v676 = vld [vmem:[%s5] sm:$0xff]
        %v677 = vld [vmem:[%s5 + $0x8] sm:$0xff]
        %v678 = vld [vmem:[%s5 + $0x10] sm:$0xff]
        %v679 = vld [vmem:[%s5 + $0x18] sm:$0xff]
        %v680 = vld [vmem:[%s5 + $0x20] sm:$0xff]
        %v681 = vld [vmem:[%s5 + $0x28] sm:$0xff]
        %v682 = vld [vmem:[%s5 + $0x30] sm:$0xff]
        %v683 = vld [vmem:[%s5 + $0x38] sm:$0xff]
        %685 = vset.pattern.permute.xlu0 0
        %686 = vperm.xlu0 %685, %v676
        %v687 = vpop.permute.xlu0 %686
        %690 = vset.pattern.permute.xlu0 0
        %691 = vperm.xlu0 %690, %v677
        %v692 = vpop.permute.xlu0 %691
        %695 = vset.pattern.permute.xlu0 0
        %696 = vperm.xlu0 %695, %v678
        %v697 = vpop.permute.xlu0 %696
        %700 = vset.pattern.permute.xlu0 0
        %701 = vperm.xlu0 %700, %v679
        %v702 = vpop.permute.xlu0 %701
        %705 = vset.pattern.permute.xlu0 0
        %706 = vperm.xlu0 %705, %v680
        %v707 = vpop.permute.xlu0 %706
        %710 = vset.pattern.permute.xlu0 0
        %711 = vperm.xlu0 %710, %v681
        %v712 = vpop.permute.xlu0 %711
        %715 = vset.pattern.permute.xlu0 0
        %716 = vperm.xlu0 %715, %v682
        %v717 = vpop.permute.xlu0 %716
        %720 = vset.pattern.permute.xlu0 0
        %721 = vperm.xlu0 %720, %v683
        %v722 = vpop.permute.xlu0 %721
        %v724 = vmul.f32 %v668, %v687
        %v725 = vmul.f32 %v669, %v692
        %v726 = vmul.f32 %v670, %v697
        %v727 = vmul.f32 %v671, %v702
        %v728 = vmul.f32 %v672, %v707
        %v729 = vmul.f32 %v673, %v712
        %v730 = vmul.f32 %v674, %v717
        %v731 = vmul.f32 %v675, %v722
        %v732 = vadd.f32 %v724, %v725
        %v733 = vadd.f32 %v732, %v726
        %v734 = vadd.f32 %v733, %v727
        %v735 = vadd.f32 %v734, %v728
        %v736 = vadd.f32 %v735, %v729
        %v737 = vadd.f32 %v736, %v730
        %v738 = vadd.f32 %v737, %v731
        %v739 = vrot.slane %v738, 4
        %v740 = vadd.f32 %v738, %v739
        %v741 = vrot.slane %v740, 2
        %v742 = vadd.f32 %v740, %v741
        %v743 = vrot.slane %v742, 1
        %v744 = vadd.f32 %v742, %v743
        %v745 = vld [vmem:[#allocation2] sm:$0x1]
        %747 = vset.pattern.permute.xlu0 0
        %748 = vperm.xlu0 %747, %v745
        %v749 = vpop.permute.xlu0 %748
        %v751 = vperm.slane %v749, 0
        %v752 = vadd.f32 %v744, %v751
        %753 = vst [vmem:[%s324] sm:$0x1] %v752
        %s754 = sand.u32 %s183, 1
        %s755 = scalar_lea.sflag [#allocation5], %s754
        %s756 = sand.u32 %s183, 1
        %s757 = scalar_lea.vmem [#allocation4], %s756
        // Predicated region
        $region87: #{tpu_custom_call.1} parent=81 // pred_check
          %p758 = pneg %p193
        $region88: #{tpu_custom_call.1} parent=81 // pred_check_branch
          %760 = sbr.rel (%p758) target = $region90
        $region89: #{tpu_custom_call.1} parent=81 // pred_region
          %762 = vsyncadd %s755, 0
          %s763 = scalar_lea.hbm %s7, %s23
          %s765 = sshll.u32 %s757, 4
          %s766 = int_to_ptr.vmem [resolvable:$true] %s765
          %s767 = sshll.u32 %s763, 4
          %s768 = int_to_ptr.hbm [resolvable:$true] %s767
          %770 = dma.vmem_to_hbm [thread:$0]  %s766, 16, %s768, %s755
        $region90: #{tpu_custom_call.1} parent=81 // pred_fallthru
          _
      $region82: #{tpu_custom_call.1} parent=5 // pred_fallthru
        _
      %p771 = scmp.le.s32.totalorder 2, %s18
      // Predicated region
      $region91: #{tpu_custom_call.1} parent=5 // pred_check
        %p772 = pneg %p771
      $region92: #{tpu_custom_call.1} parent=5 // pred_check_branch
        %774 = sbr.rel (%p772) target = $region94
      $region93: #{tpu_custom_call.1} parent=5 // pred_region
        %s775 = ssub.s32 %s18, 2
        // Predicated region
        $region95: #{tpu_custom_call.1} parent=93 // pred_check
          %p776 = pneg %p199
        $region96: #{tpu_custom_call.1} parent=93 // pred_check_branch
          %778 = sbr.rel (%p776) target = $region98
        $region97: #{tpu_custom_call.1} parent=93 // pred_region
          %s779 = sand.u32 %s184, 1
          %s780 = scalar_lea.sflag [#allocation5], %s779
          %s781 = sand.u32 %s184, 1
          %s782 = scalar_lea.vmem [#allocation4], %s781
          %784 = dma.done %s780, 16
        $region98: #{tpu_custom_call.1} parent=93 // pred_fallthru
          _
      $region94: #{tpu_custom_call.1} parent=5 // pred_fallthru
        _
    $region6: #{tpu_custom_call.1} parent=1 // loop_footer
      %s22 = sadd.s32 1, %s18
    $region7: #{tpu_custom_call.1} parent=1 // loop_footer_branch
      %17 = sbr.rel target = $region3
    $region8: #{tpu_custom_call.1} parent=1 // loop_exit
      _
    %785 = vsyncpa [#allocation5], 1
    %s786 = scalar_lea.sflag [#allocation5], 1
    %787 = vsyncpa %s786, 1

</llo_original>
